<compile_context>
chip_gen: v5e
topology: v5e:2x2
jax: 0.10.0
libtpu: 0.0.40
codegen_flags: <defaults>
</compile_context>

<pallas_src>
import itertools

import numpy as np
import jax
import jax.numpy as jnp
from jax.experimental import pallas as pl
from jax.experimental.pallas import tpu as pltpu


# Degree-12 Taylor coefficients of cos(pi*r) in powers of r^2 (|r| <= 0.5).
_C1 = -4.9348022005446793      # -pi^2/2
_C2 = 4.0587121264167682       #  pi^4/24
_C3 = -1.3352627688545895      # -pi^6/720
_C4 = 0.23533063035889320      #  pi^8/40320
_C5 = -0.025806891390014061    # -pi^10/3628800
_C6 = 0.0019295743094039231    #  pi^12/479001600


def _cospi(t):
    """cos(pi * t) via integer range reduction + short even polynomial (VPU only)."""
    k = jnp.floor(t + 0.5)                     # nearest integer
    r = t - k                                  # |r| <= 0.5
    parity = k - 2.0 * jnp.floor(k * 0.5)      # 0.0 or 1.0
    sign = 1.0 - 2.0 * parity                  # (-1)^k
    r2 = r * r
    p = _C6
    p = p * r2 + _C5
    p = p * r2 + _C4
    p = p * r2 + _C3
    p = p * r2 + _C2
    p = p * r2 + _C1
    p = p * r2 + 1.0
    return sign * p


def fourier_kernel(obs_ref, lb_ref, ub_ref, combin_ref, bias_ref, out_ref):
    # obs_ref: (tb, D), lb/ub: (1, D), combin_ref: (D, tf) [pre-scaled by 1/range],
    # bias_ref: (1, tf), out_ref: (tb, tf)
    obs = obs_ref[...]
    lb = lb_ref[...]
    ub = ub_ref[...]
    clipped = jnp.minimum(jnp.maximum(obs, lb), ub)

    D = obs.shape[1]
    cb = combin_ref[...]
    if D <= 8:
        # Tiny contraction: 4 broadcast FMAs on the VPU beat a 97%-padded MXU matmul.
        acc = clipped[:, 0:1] * cb[0:1, :]
        for d in range(1, D):
            acc = acc + clipped[:, d:d + 1] * cb[d:d + 1, :]
    else:
        acc = jnp.dot(clipped, cb, preferred_element_type=jnp.float32)

    t = acc + bias_ref[...]        # t == obs_norm @ combin  (pi folded into _cospi)
    out_ref[...] = _cospi(t)


def _largest_divisor(n, candidates):
    for c in candidates:
        if c <= n and n % c == 0:
            return c
    return n


def fourier_extractor(observations, lb, ub, combin):
    """observations: (B, D); lb/ub: (D,); combin: (D, F). Returns cos(pi * obs_norm @ combin)."""
    observations = observations.astype(jnp.float32)
    lb = lb.astype(jnp.float32)
    ub = ub.astype(jnp.float32)
    combin = combin.astype(jnp.float32)

    B, D = observations.shape
    F = combin.shape[1]

    # Fold normalization into the projection (one-time (D,F)-sized XLA work).
    # NOTE: matches PyTorch semantics -- degenerate dims (ub == lb) yield inf/nan.
    inv_range = 1.0 / (ub - lb)                 # (D,)
    combin_s = combin * inv_range[:, None]      # (D, F)
    bias = (-(lb * inv_range)) @ combin         # (F,)
    lb2 = lb.reshape(1, D)
    ub2 = ub.reshape(1, D)
    bias2 = bias.reshape(1, F)

    # Lane-dense F tiles (multiples of 256 preferred), batch tiles multiple of 8
    # (or full B). Double-buffered blocks stay far below v7x's 32 MiB scoped VMEM.
    tile_b = _largest_divisor(B, (512, 256, 128, 64, 32, 16, 8))
    tile_f = _largest_divisor(F, (2048, 1024, 512, 256, 128))
    # Batch is the innermost grid axis so the combin/bias tiles stay resident across it.
    grid = (F // tile_f, B // tile_b)

    cost = pl.CostEstimate(
        flops=2 * B * D * F + 12 * B * F,
        transcendentals=B * F,
        bytes_accessed=4 * (B * D + D * F + B * F + F + 2 * D),
    )

    return pl.pallas_call(
        fourier_kernel,
        out_shape=jax.ShapeDtypeStruct((B, F), jnp.float32),
        grid=grid,
        in_specs=[
            pl.BlockSpec((tile_b, D), lambda j, i: (i, 0)),
            pl.BlockSpec((1, D), lambda j, i: (0, 0)),
            pl.BlockSpec((1, D), lambda j, i: (0, 0)),
            pl.BlockSpec((D, tile_f), lambda j, i: (0, j)),
            pl.BlockSpec((1, tile_f), lambda j, i: (0, j)),
        ],
        out_specs=pl.BlockSpec((tile_b, tile_f), lambda j, i: (i, j)),
        compiler_params=pltpu.CompilerParams(
            dimension_semantics=("parallel", "parallel"),
        ),
        cost_estimate=cost,
    )(observations, lb2, ub2, combin_s, bias2)


def make_combin(order: int, obs_dim: int) -> np.ndarray:
    """Deterministic full Fourier-basis exponent matrix: (obs_dim, (order+1)**obs_dim)."""
    combin = np.array(
        list(itertools.product(*[np.arange(order + 1) for _ in range(obs_dim)])),
        dtype=np.float64,
    )  # (features_dim, obs_dim)
    return combin.T.astype(np.float32)  # (obs_dim, features_dim)


def reference(observations, lb, ub, combin):
    obs = np.asarray(observations, dtype=np.float64)
    lb = np.asarray(lb, dtype=np.float64)
    ub = np.asarray(ub, dtype=np.float64)
    cb = np.asarray(combin, dtype=np.float64)
    clipped = np.clip(obs, lb[None, :], ub[None, :])
    norm = (clipped - lb[None, :]) / (ub[None, :] - lb[None, :])
    return np.cos(np.pi * (norm @ cb))


if __name__ == "__main__":
    # Box observation space: obs_dim = 4, order = 3 -> features_dim = 4**4 = 256
    obs_dim = 4
    order = 3
    batch = 8

    lb_np = np.array([-1.0, -2.0, 0.0, -0.5], dtype=np.float32)
    ub_np = np.array([1.0, 2.0, 3.0, 0.5], dtype=np.float32)
    combin_np = make_combin(order, obs_dim)  # (4, 256)

    key = jax.random.PRNGKey(0)
    # Sample observations slightly outside the box so the clip path is exercised.
    obs = jax.random.uniform(
        key, (batch, obs_dim), minval=-3.0, maxval=3.0, dtype=jnp.float32
    )

    out = fourier_extractor(
        obs, jnp.asarray(lb_np), jnp.asarray(ub_np), jnp.asarray(combin_np)
    )
    out = jax.block_until_ready(out)

    ref = reference(np.asarray(obs), lb_np, ub_np, combin_np)
    np.testing.assert_allclose(np.asarray(out), ref, rtol=1e-4, atol=1e-4)

    print("KERNEL_OK")
</pallas_src>

<mosaic_0001>
module attributes {stable_mosaic.version = 11 : i64} {
  func.func @fourier_kernel(%arg0: i32, %arg1: i32, %arg2: memref<8x4xf32, #tpu.memory_space<vmem>>, %arg3: memref<1x4xf32, #tpu.memory_space<vmem>>, %arg4: memref<1x4xf32, #tpu.memory_space<vmem>>, %arg5: memref<4x256xf32, #tpu.memory_space<vmem>>, %arg6: memref<1x256xf32, #tpu.memory_space<vmem>>, %arg7: memref<8x256xf32, #tpu.memory_space<vmem>>) attributes {dimension_semantics = [#tpu.dimension_semantics<parallel>, #tpu.dimension_semantics<parallel>], iteration_bounds = array<i64: 1, 1>, scalar_prefetch = 0 : i64, scratch_operands = 0 : i64, tpu.core_type = #tpu.core_type<tc>, window_params = [{transform_indices = @transform_0, window_bounds = array<i64: 8, 4>}, {pipeline_mode = #tpu.pipeline_mode<synchronous>, transform_indices = @transform_1, window_bounds = array<i64: 1, 4>}, {pipeline_mode = #tpu.pipeline_mode<synchronous>, transform_indices = @transform_2, window_bounds = array<i64: 1, 4>}, {transform_indices = @transform_3, window_bounds = array<i64: 4, 256>}, {transform_indices = @transform_4, window_bounds = array<i64: 1, 256>}, {transform_indices = @transform_5, window_bounds = array<i64: 8, 256>}]} {
    %c0 = arith.constant 0 : index
    %c0_0 = arith.constant 0 : index
    %0 = vector.load %arg2[%c0, %c0_0] : memref<8x4xf32, #tpu.memory_space<vmem>>, vector<8x4xf32>
    %c0_1 = arith.constant 0 : index
    %c0_2 = arith.constant 0 : index
    %1 = vector.load %arg3[%c0_1, %c0_2] : memref<1x4xf32, #tpu.memory_space<vmem>>, vector<1x4xf32>
    %c0_3 = arith.constant 0 : index
    %c0_4 = arith.constant 0 : index
    %2 = vector.load %arg4[%c0_3, %c0_4] : memref<1x4xf32, #tpu.memory_space<vmem>>, vector<1x4xf32>
    %3 = vector.broadcast %1 : vector<1x4xf32> to vector<8x4xf32>
    %4 = arith.maximumf %0, %3 : vector<8x4xf32>
    %5 = vector.broadcast %2 : vector<1x4xf32> to vector<8x4xf32>
    %6 = arith.minimumf %4, %5 : vector<8x4xf32>
    %c0_5 = arith.constant 0 : index
    %c0_6 = arith.constant 0 : index
    %7 = vector.load %arg5[%c0_5, %c0_6] : memref<4x256xf32, #tpu.memory_space<vmem>>, vector<4x256xf32>
    %8 = vector.extract_strided_slice %6 {offsets = [0, 0], sizes = [8, 1], strides = [1, 1]} : vector<8x4xf32> to vector<8x1xf32>
    %9 = vector.extract_strided_slice %7 {offsets = [0, 0], sizes = [1, 256], strides = [1, 1]} : vector<4x256xf32> to vector<1x256xf32>
    %10 = vector.broadcast %8 : vector<8x1xf32> to vector<8x256xf32>
    %11 = vector.broadcast %9 : vector<1x256xf32> to vector<8x256xf32>
    %12 = arith.mulf %10, %11 : vector<8x256xf32>
    %13 = vector.extract_strided_slice %6 {offsets = [0, 1], sizes = [8, 1], strides = [1, 1]} : vector<8x4xf32> to vector<8x1xf32>
    %14 = vector.extract_strided_slice %7 {offsets = [1, 0], sizes = [1, 256], strides = [1, 1]} : vector<4x256xf32> to vector<1x256xf32>
    %15 = vector.broadcast %13 : vector<8x1xf32> to vector<8x256xf32>
    %16 = vector.broadcast %14 : vector<1x256xf32> to vector<8x256xf32>
    %17 = arith.mulf %15, %16 : vector<8x256xf32>
    %18 = arith.addf %12, %17 : vector<8x256xf32>
    %19 = vector.extract_strided_slice %6 {offsets = [0, 2], sizes = [8, 1], strides = [1, 1]} : vector<8x4xf32> to vector<8x1xf32>
    %20 = vector.extract_strided_slice %7 {offsets = [2, 0], sizes = [1, 256], strides = [1, 1]} : vector<4x256xf32> to vector<1x256xf32>
    %21 = vector.broadcast %19 : vector<8x1xf32> to vector<8x256xf32>
    %22 = vector.broadcast %20 : vector<1x256xf32> to vector<8x256xf32>
    %23 = arith.mulf %21, %22 : vector<8x256xf32>
    %24 = arith.addf %18, %23 : vector<8x256xf32>
    %25 = vector.extract_strided_slice %6 {offsets = [0, 3], sizes = [8, 1], strides = [1, 1]} : vector<8x4xf32> to vector<8x1xf32>
    %26 = vector.extract_strided_slice %7 {offsets = [3, 0], sizes = [1, 256], strides = [1, 1]} : vector<4x256xf32> to vector<1x256xf32>
    %27 = vector.broadcast %25 : vector<8x1xf32> to vector<8x256xf32>
    %28 = vector.broadcast %26 : vector<1x256xf32> to vector<8x256xf32>
    %29 = arith.mulf %27, %28 : vector<8x256xf32>
    %30 = arith.addf %24, %29 : vector<8x256xf32>
    %c0_7 = arith.constant 0 : index
    %c0_8 = arith.constant 0 : index
    %31 = vector.load %arg6[%c0_7, %c0_8] : memref<1x256xf32, #tpu.memory_space<vmem>>, vector<1x256xf32>
    %32 = vector.broadcast %31 : vector<1x256xf32> to vector<8x256xf32>
    %33 = arith.addf %30, %32 : vector<8x256xf32>
    %cst = arith.constant 5.000000e-01 : f32
    %34 = vector.broadcast %cst : f32 to vector<8x256xf32>
    %35 = arith.addf %33, %34 : vector<8x256xf32>
    %36 = math.floor %35 : vector<8x256xf32>
    %37 = arith.subf %33, %36 : vector<8x256xf32>
    %cst_9 = arith.constant 5.000000e-01 : f32
    %38 = vector.broadcast %cst_9 : f32 to vector<8x256xf32>
    %39 = arith.mulf %36, %38 : vector<8x256xf32>
    %40 = math.floor %39 : vector<8x256xf32>
    %cst_10 = arith.constant 2.000000e+00 : f32
    %41 = vector.broadcast %cst_10 : f32 to vector<8x256xf32>
    %42 = arith.mulf %41, %40 : vector<8x256xf32>
    %43 = arith.subf %36, %42 : vector<8x256xf32>
    %cst_11 = arith.constant 2.000000e+00 : f32
    %44 = vector.broadcast %cst_11 : f32 to vector<8x256xf32>
    %45 = arith.mulf %44, %43 : vector<8x256xf32>
    %cst_12 = arith.constant 1.000000e+00 : f32
    %46 = vector.broadcast %cst_12 : f32 to vector<8x256xf32>
    %47 = arith.subf %46, %45 : vector<8x256xf32>
    %48 = arith.mulf %37, %37 : vector<8x256xf32>
    %cst_13 = arith.constant 0.0019295743 : f32
    %49 = vector.broadcast %cst_13 : f32 to vector<8x256xf32>
    %50 = arith.mulf %49, %48 : vector<8x256xf32>
    %cst_14 = arith.constant -0.0258068908 : f32
    %51 = vector.broadcast %cst_14 : f32 to vector<8x256xf32>
    %52 = arith.addf %50, %51 : vector<8x256xf32>
    %53 = arith.mulf %52, %48 : vector<8x256xf32>
    %cst_15 = arith.constant 0.235330626 : f32
    %54 = vector.broadcast %cst_15 : f32 to vector<8x256xf32>
    %55 = arith.addf %53, %54 : vector<8x256xf32>
    %56 = arith.mulf %55, %48 : vector<8x256xf32>
    %cst_16 = arith.constant -1.33526278 : f32
    %57 = vector.broadcast %cst_16 : f32 to vector<8x256xf32>
    %58 = arith.addf %56, %57 : vector<8x256xf32>
    %59 = arith.mulf %58, %48 : vector<8x256xf32>
    %cst_17 = arith.constant 4.05871201 : f32
    %60 = vector.broadcast %cst_17 : f32 to vector<8x256xf32>
    %61 = arith.addf %59, %60 : vector<8x256xf32>
    %62 = arith.mulf %61, %48 : vector<8x256xf32>
    %cst_18 = arith.constant -4.93480206 : f32
    %63 = vector.broadcast %cst_18 : f32 to vector<8x256xf32>
    %64 = arith.addf %62, %63 : vector<8x256xf32>
    %65 = arith.mulf %64, %48 : vector<8x256xf32>
    %cst_19 = arith.constant 1.000000e+00 : f32
    %66 = vector.broadcast %cst_19 : f32 to vector<8x256xf32>
    %67 = arith.addf %65, %66 : vector<8x256xf32>
    %68 = arith.mulf %47, %67 : vector<8x256xf32>
    %c0_20 = arith.constant 0 : index
    %c0_21 = arith.constant 0 : index
    %69 = vector.load %arg7[%c0_20, %c0_21] : memref<8x256xf32, #tpu.memory_space<vmem>>, vector<8x256xf32>
    tpu.vector_store %arg7[%c0_20, %c0_21], %68 {strides = array<i32>} : memref<8x256xf32, #tpu.memory_space<vmem>>, vector<8x256xf32>,
    return
  }
  func.func @transform_0(%arg0: i32, %arg1: i32) -> (i32, i32) {
    %c0_i32 = arith.constant 0 : i32
    %c0_i32_0 = arith.constant 0 : i32
    return %arg1, %c0_i32 : i32, i32
  }
  func.func @transform_1(%arg0: i32, %arg1: i32) -> (i32, i32) {
    %c0_i32 = arith.constant 0 : i32
    %c0_i32_0 = arith.constant 0 : i32
    %c0_i32_1 = arith.constant 0 : i32
    return %c0_i32, %c0_i32_0 : i32, i32
  }
  func.func @transform_2(%arg0: i32, %arg1: i32) -> (i32, i32) {
    %c0_i32 = arith.constant 0 : i32
    %c0_i32_0 = arith.constant 0 : i32
    %c0_i32_1 = arith.constant 0 : i32
    return %c0_i32, %c0_i32_0 : i32, i32
  }
  func.func @transform_3(%arg0: i32, %arg1: i32) -> (i32, i32) {
    %c0_i32 = arith.constant 0 : i32
    %c0_i32_0 = arith.constant 0 : i32
    return %c0_i32, %arg0 : i32, i32
  }
  func.func @transform_4(%arg0: i32, %arg1: i32) -> (i32, i32) {
    %c0_i32 = arith.constant 0 : i32
    %c0_i32_0 = arith.constant 0 : i32
    return %c0_i32, %arg0 : i32, i32
  }
  func.func @transform_5(%arg0: i32, %arg1: i32) -> (i32, i32) {
    %c0_i32 = arith.constant 0 : i32
    return %arg1, %arg0 : i32, i32
  }
}

</mosaic_0001>

<llo_original>
// kernel: tpu_custom_call.1
$region0: #{tpu_custom_call.1}
  #allocation0 [shape = 'u32[]', space=smem, size = 0x4, offset = 0x4, fixed_abs, tag = 'smem constant byte address 0x4 - core index']
  #allocation1 [shape = 'u32[72,128]{1,0:T(1,128)}', space=vmem, size = 0x9000, scoped, tag = 'internal scratch']
  %s0 = inlined_call_operand.vmem [shape: f32[8,4], index: 0, kind: input, shape index: {}]
  %s1 = inlined_call_operand.vmem [shape: f32[1,4], index: 1, kind: input, shape index: {}]
  %s2 = inlined_call_operand.vmem [shape: f32[1,4], index: 2, kind: input, shape index: {}]
  %s3 = inlined_call_operand.vmem [shape: f32[4,256], index: 3, kind: input, shape index: {}]
  %s4 = inlined_call_operand.vmem [shape: f32[1,256], index: 4, kind: input, shape index: {}]
  %s5 = inlined_call_operand.hbm [shape: f32[8,256], index: 5, kind: output, shape index: {}]
  %s6 = sld [smem:[#allocation0]]
  $region30: #{tpu_custom_call.1} parent=0
    _
  %s8 = ssub.s32 1, %s6
  %s9 = scalar_select 0, %s8, %s6
  $region1: #{tpu_custom_call.1} parent=0
    #allocation2 [shape = 'u8[8192]{0}', space=vmem, size = 0x2000, scoped, tag = 'output window, operand 0, single buffered']
    #allocation3 [shape = 's32[1]{0}', space=sflag, size = 0x4, scoped, tag = 'scoped memory for tpu_custom_call.1']
    %10 = vsyncpa [#allocation3], 0
    // Predicated region
    $region2: #{tpu_custom_call.1} parent=1 // pred_check
      _
    $region3: #{tpu_custom_call.1} parent=1 // pred_check_branch
      %12 = sbr.rel (0) target = $region5
    $region4: #{tpu_custom_call.1} parent=1 // pred_region
      _
    $region5: #{tpu_custom_call.1} parent=1 // pred_fallthru
      _
    // Predicated region
    $region6: #{tpu_custom_call.1} parent=1 // pred_check
      _
    $region7: #{tpu_custom_call.1} parent=1 // pred_check_branch
      %14 = sbr.rel (0) target = $region9
    $region8: #{tpu_custom_call.1} parent=1 // pred_region
      _
    $region9: #{tpu_custom_call.1} parent=1 // pred_fallthru
      _
    // Predicated region
    $region10: #{tpu_custom_call.1} parent=1 // pred_check
      _
    $region11: #{tpu_custom_call.1} parent=1 // pred_check_branch
      %16 = sbr.rel (0) target = $region13
    $region12: #{tpu_custom_call.1} parent=1 // pred_region
      _
    $region13: #{tpu_custom_call.1} parent=1 // pred_fallthru
      _
    // Predicated region
    $region14: #{tpu_custom_call.1} parent=1 // pred_check
      _
    $region15: #{tpu_custom_call.1} parent=1 // pred_check_branch
      %18 = sbr.rel (0) target = $region17
    $region16: #{tpu_custom_call.1} parent=1 // pred_region
      _
    $region17: #{tpu_custom_call.1} parent=1 // pred_fallthru
      _
    // Predicated region
    $region18: #{tpu_custom_call.1} parent=1 // pred_check
      _
    $region19: #{tpu_custom_call.1} parent=1 // pred_check_branch
      %20 = sbr.rel (0) target = $region21
    $region20: #{tpu_custom_call.1} parent=1 // pred_region
      _
    $region21: #{tpu_custom_call.1} parent=1 // pred_fallthru
      _
    %v21 = vld [vmem:[%s0] sm:$0xff]
    %v22 = vld [vmem:[%s1] sm:$0x1]
    %v23 = vld [vmem:[%s2] sm:$0x1]
    %v25 = vperm.slane %v22, 0
    %v27 = vmax.f32 %v21, %v25
    %v29 = vperm.slane %v23, 0
    %v31 = vmin.f32 %v27, %v29
    %v32 = vld [vmem:[%s3] sm:$0xff]
    %34 = vset.pattern.permute.xlu0 0
    %35 = vperm.xlu0 %34, %v31
    %v36 = vpop.permute.xlu0 %35
    %v39 = vperm.slane %v32, 0
    %v40 = vperm.slane %v32, 4
    %v43 = vperm.slane %v39, 0
    %v44 = vperm.slane %v40, 0
    %v45 = vmul.f32 %v36, %v43
    %v46 = vmul.f32 %v36, %v44
    %47 = vset.pattern.permute.xlu0 1
    %48 = vperm.xlu0 %47, %v31
    %v49 = vpop.permute.xlu0 %48
    %v51 = vperm.slane %v32, 1
    %v52 = vperm.slane %v32, 5
    %v55 = vperm.slane %v51, 1
    %v56 = vperm.slane %v52, 1
    %v57 = vmul.f32 %v49, %v55
    %v58 = vmul.f32 %v49, %v56
    %v59 = vadd.f32 %v45, %v57
    %v60 = vadd.f32 %v46, %v58
    %61 = vset.pattern.permute.xlu0 2
    %62 = vperm.xlu0 %61, %v31
    %v63 = vpop.permute.xlu0 %62
    %v65 = vperm.slane %v32, 2
    %v66 = vperm.slane %v32, 6
    %v69 = vperm.slane %v65, 2
    %v70 = vperm.slane %v66, 2
    %v71 = vmul.f32 %v63, %v69
    %v72 = vmul.f32 %v63, %v70
    %v73 = vadd.f32 %v59, %v71
    %v74 = vadd.f32 %v60, %v72
    %75 = vset.pattern.permute.xlu0 3
    %76 = vperm.xlu0 %75, %v31
    %v77 = vpop.permute.xlu0 %76
    %v79 = vperm.slane %v32, 3
    %v80 = vperm.slane %v32, 7
    %v83 = vperm.slane %v79, 3
    %v84 = vperm.slane %v80, 3
    %v85 = vmul.f32 %v77, %v83
    %v86 = vmul.f32 %v77, %v84
    %v87 = vadd.f32 %v73, %v85
    %v88 = vadd.f32 %v74, %v86
    %v89 = vld [vmem:[%s4] sm:$0x3]
    %v91 = vperm.slane %v89, 0
    %v92 = vperm.slane %v89, 1
    %v95 = vadd.f32 %v87, %v91
    %v96 = vadd.f32 %v88, %v92
    %v97 = vadd.f32 %v95, 0.5
    %v98 = vadd.f32 %v96, 0.5
    %v99 = vfloor.f32 %v97
    %v100 = vfloor.f32 %v98
    %v101 = vsub.f32 %v95, %v99
    %v102 = vsub.f32 %v96, %v100
    %v103 = vmul.f32 %v99, 0.5
    %v104 = vmul.f32 %v100, 0.5
    %v105 = vfloor.f32 %v103
    %v106 = vfloor.f32 %v104
    %v107 = vmul.f32 %v105, 2.0
    %v108 = vmul.f32 %v106, 2.0
    %v109 = vsub.f32 %v99, %v107
    %v110 = vsub.f32 %v100, %v108
    %v111 = vmul.f32 %v109, 2.0
    %v112 = vmul.f32 %v110, 2.0
    %v113 = vsub.f32 1.0, %v111
    %v114 = vsub.f32 1.0, %v112
    %v115 = vmul.f32 %v101, %v101
    %v116 = vmul.f32 %v102, %v102
    %v117 = vmul.f32 %v115, 0.0019295743
    %v118 = vmul.f32 %v116, 0.0019295743
    %v119 = vadd.f32 %v117, -0.02580689
    %v120 = vadd.f32 %v118, -0.02580689
    %v121 = vmul.f32 %v119, %v115
    %v122 = vmul.f32 %v120, %v116
    %v123 = vadd.f32 %v121, 0.23533063
    %v124 = vadd.f32 %v122, 0.23533063
    %v125 = vmul.f32 %v123, %v115
    %v126 = vmul.f32 %v124, %v116
    %v127 = vadd.f32 %v125, -1.3352628
    %v128 = vadd.f32 %v126, -1.3352628
    %v129 = vmul.f32 %v127, %v115
    %v130 = vmul.f32 %v128, %v116
    %v131 = vadd.f32 %v129, 4.058712
    %v132 = vadd.f32 %v130, 4.058712
    %v133 = vmul.f32 %v131, %v115
    %v134 = vmul.f32 %v132, %v116
    %v135 = vadd.f32 %v133, -4.934802
    %v136 = vadd.f32 %v134, -4.934802
    %v137 = vmul.f32 %v135, %v115
    %v138 = vmul.f32 %v136, %v116
    %v139 = vadd.f32 %v137, 1.0
    %v140 = vadd.f32 %v138, 1.0
    %v141 = vmul.f32 %v113, %v139
    %v142 = vmul.f32 %v114, %v140
    %143 = vst [vmem:[#allocation2] sm:$0xff] %v141
    %144 = vst [vmem:[#allocation2 + $0x8] sm:$0xff] %v142
    // Predicated region
    $region22: #{tpu_custom_call.1} parent=1 // pred_check
      _
    $region23: #{tpu_custom_call.1} parent=1 // pred_check_branch
      %146 = sbr.rel (0) target = $region25
    $region24: #{tpu_custom_call.1} parent=1 // pred_region
      %148 = vsyncadd [#allocation3], 0
      %s150 = sshll.u32 [#allocation2], 4
      %s151 = int_to_ptr.vmem [resolvable:$true] %s150
      %s152 = sshll.u32 %s5, 4
      %s153 = int_to_ptr.hbm [resolvable:$true] %s152
      %155 = dma.vmem_to_hbm [thread:$0]  %s151, 256, %s153, [#allocation3]
    $region25: #{tpu_custom_call.1} parent=1 // pred_fallthru
      _
    // Predicated region
    $region26: #{tpu_custom_call.1} parent=1 // pred_check
      _
    $region27: #{tpu_custom_call.1} parent=1 // pred_check_branch
      %157 = sbr.rel (0) target = $region29
    $region28: #{tpu_custom_call.1} parent=1 // pred_region
      %159 = dma.done [#allocation3], 256
    $region29: #{tpu_custom_call.1} parent=1 // pred_fallthru
      _
    %160 = vsyncpa [#allocation3], 1

</llo_original>
